<compile_context>
chip_gen: v5e
topology: v5e:2x2
jax: 0.10.0
libtpu: 0.0.40
codegen_flags: <defaults>
</compile_context>

<pallas_src>
import functools

import jax
import jax.numpy as jnp
from jax.experimental import pallas as pl
from jax.experimental.pallas import tpu as pltpu


# ----------------------------------------------------------------------------
# Pallas kernel: per-patch L2 normalization, RBF-on-sphere embedding against
# the filters W, multiplication by k(W,W)^{-1/2}, and norm restoration.
# Everything is computed in the transposed (feature-major) orientation so
# patches run along lanes and no in-kernel transposes are needed.
# ----------------------------------------------------------------------------
def _ckn_project_kernel(pt_ref, ws_ref, nmT_ref, o_ref, *, inv_sigma2, eps):
    # pt_ref : (D, tm)  patch tile (one image), patches along lanes
    # ws_ref : (K, D)   filters, pre-scaled by 1/sigma^2 on the host (resident)
    # nmT_ref: (K, K)   transpose of k(W,W)^{-1/2}                   (resident)
    # o_ref  : (K, tm)  lane-dense output tile
    pt = pt_ref[...].astype(jnp.float32)

    # per-patch L2 norm -> (1, tm); clamp matches torch.clamp(min=eps)
    sq = jnp.sum(pt * pt, axis=0, keepdims=True)
    norms = jnp.maximum(jnp.sqrt(sq), eps)          # (1, tm)
    inv_norms = 1.0 / norms                         # exact divide (mem-bound)

    # RBF-on-sphere kernel between unit-norm patches and unit-norm filters:
    #   k(x, w) = exp((<x/||x||, w> - 1) / sigma^2)
    # With W pre-scaled by 1/sigma^2 this is exp(s * (1/||x||) - 1/sigma^2).
    sT = jnp.dot(ws_ref[...], pt, preferred_element_type=jnp.float32)  # (K, tm)
    eT = jnp.exp(sT * inv_norms - inv_sigma2)

    # projection onto the subspace: (e @ nm)^T = nm^T @ e^T
    projT = jnp.dot(nmT_ref[...], eT, preferred_element_type=jnp.float32)

    # restore the patch norms (projected_patches * norm_patches.unsqueeze(1))
    o_ref[...] = (projT * norms).astype(o_ref.dtype)


def ckn_project(patches, W, normalization, *, patch_sigma, eps=1e-10,
                tm_max=8192):
    """patches: (N, D, M) f32 patch slab (M = Ho*Wo patches per image);
    W: (K, D) unit-norm filter rows; normalization: (K, K) = k(W,W)^{-1/2}.

    Returns the projected patch maps in the final layout: (N, K, M) f32.
    """
    N, D, M = patches.shape
    K = W.shape[0]
    inv_sigma2 = float(1.0 / (patch_sigma * patch_sigma))

    # Lane-tile over the per-image patch axis.  If M fits in one tile we use
    # the full dimension (always a legal block); otherwise a multiple-of-128
    # tile capped at tm_max (default 8192: grid-step overhead <10% of the
    # per-tile DMA time on every generation, VMEM < 5 MB double-buffered).
    # TODO(synk): on v7x, tm_max=16384 hides even more overhead; still fits.
    assert tm_max % 128 == 0
    tm = M if M <= tm_max else tm_max
    grid = (N, pl.cdiv(M, tm))

    w_scaled = (W * inv_sigma2).astype(jnp.float32)
    # Pass the transpose so nm^T @ e^T matches `e @ nm` exactly even when the
    # finite-iteration Newton-Schulz result is not perfectly symmetric.
    nm_t = jnp.transpose(normalization).astype(jnp.float32)

    kernel = functools.partial(
        _ckn_project_kernel, inv_sigma2=inv_sigma2, eps=float(eps))

    MT = N * M
    cost = pl.CostEstimate(
        flops=int(2 * MT * D * K + 2 * MT * K * K + 3 * MT * D + 4 * MT * K),
        transcendentals=int(MT * K + 2 * MT),
        bytes_accessed=int(4 * (MT * D + MT * K + K * D + K * K)),
    )

    return pl.pallas_call(
        kernel,
        out_shape=jax.ShapeDtypeStruct((N, K, M), jnp.float32),
        grid_spec=pltpu.PrefetchScalarGridSpec(
            num_scalar_prefetch=0,
            grid=grid,
            in_specs=[
                # patch tile of one image, batch dim squeezed -> (D, tm)
                pl.BlockSpec((None, D, tm), lambda n, i: (n, 0, i)),
                pl.BlockSpec((K, D), lambda n, i: (0, 0)),   # scaled W, resident
                pl.BlockSpec((K, K), lambda n, i: (0, 0)),   # nm^T, resident
            ],
            # output written directly in (N, K, M) layout -> (K, tm) per step
            out_specs=pl.BlockSpec((None, K, tm), lambda n, i: (n, 0, i)),
        ),
        compiler_params=pltpu.CompilerParams(
            dimension_semantics=("parallel", "parallel")),
        cost_estimate=cost,
    )(patches, w_scaled, nm_t)


# ----------------------------------------------------------------------------
# Plain-JAX glue: patch extraction, normalization-matrix setup, pooling.
# ----------------------------------------------------------------------------
def images_to_patches(x, patch_size, stride):
    """x: (N, C, H, W) -> (N, C*ph*pw, Ho*Wo), unfold-compatible D ordering.

    No host-side transpose is needed: the kernel consumes this layout directly
    and emits (N, K, Ho*Wo).
    """
    N, C, H, W = x.shape
    ph, pw = patch_size
    sh, sw = stride
    Ho = (H - ph) // sh + 1
    Wo = (W - pw) // sw + 1
    cols = []
    for i in range(ph):
        for j in range(pw):
            cols.append(x[:, :, i:i + (Ho - 1) * sh + 1:sh,
                          j:j + (Wo - 1) * sw + 1:sw])      # (N, C, Ho, Wo)
    # D ordering matches torch.nn.functional.unfold: c*(ph*pw) + i*pw + j
    p = jnp.stack(cols, axis=2).reshape(N, C * ph * pw, Ho * Wo)
    return p, (N, Ho, Wo)


def rbf_sphere(X, Y, sigma):
    return jnp.exp((X @ Y.T - 1.0) / (sigma * sigma))


def inverse_sqrt_newton(A, iters=20):
    """A^{-1/2} for SPD A via Newton-Schulz (stand-in for stable_newton_with_newton)."""
    k = A.shape[0]
    norm_a = jnp.linalg.norm(A)
    Y = A / norm_a
    Z = jnp.eye(k, dtype=A.dtype)
    I = jnp.eye(k, dtype=A.dtype)

    def body(_, yz):
        Y, Z = yz
        T = 0.5 * (3.0 * I - Z @ Y)
        return (Y @ T, T @ Z)

    Y, Z = jax.lax.fori_loop(0, iters, body, (Y, Z))
    return Z / jnp.sqrt(norm_a)


def average_pool_nchw(x, kernel, stride):
    """x: (N, C, H, W) average pooling."""
    # TODO(synk): the original pool.Pool class is not provided; this assumes a
    # plain average pooling with kernel=pool_dim and stride=subsampling_factor.
    kh, kw = kernel
    sh, sw = stride
    summed = jax.lax.reduce_window(
        x, 0.0, jax.lax.add,
        window_dimensions=(1, 1, kh, kw),
        window_strides=(1, 1, sh, sw),
        padding="VALID")
    return summed / float(kh * kw)


def ckn_layer_forward(x, W, *, patch_size, stride, patch_sigma, kww_reg,
                      num_newton_iters, subsampling_factor, pool_dim):
    """Full CKNLayer.forward (normalize=True, padding=0, not precomputed)."""
    patches, (N, Ho, Wo) = images_to_patches(x, patch_size, stride)

    # compute_normalization(): k(W,W) + reg*I -> inverse matrix square root
    basis_gram = rbf_sphere(W, W, patch_sigma)
    basis_gram = basis_gram + kww_reg * jnp.eye(W.shape[0], dtype=W.dtype)
    normalization = inverse_sqrt_newton(basis_gram, iters=num_newton_iters)

    # kernel output already in (N, K, Ho*Wo) channel-major layout
    projected = ckn_project(patches, W, normalization, patch_sigma=patch_sigma)

    # patches_to_images: free reshape, no transpose
    K = W.shape[0]
    maps = projected.reshape(N, K, Ho, Wo)

    # pooling / subsampling
    f_next = average_pool_nchw(
        maps, pool_dim, (subsampling_factor, subsampling_factor))
    return f_next


if __name__ == "__main__":
    key = jax.random.PRNGKey(0)
    kx, kw = jax.random.split(key)

    # module hyper-parameters (small, consistent with the forward pass)
    patch_size = (3, 3)
    stride = (1, 1)
    n_filters = 32
    patch_sigma = 0.6
    kww_reg = 1e-3
    num_newton_iters = 20
    subsampling_factor = 2
    pool_dim = (2, 2)

    # input: NCHW, batch=2, channels=4, spatial=16
    x = jax.random.normal(kx, (2, 4, 16, 16), dtype=jnp.float32)

    # deterministic filter init (stand-in for spherical-k-means: unit-norm rows)
    patch_dim = 4 * patch_size[0] * patch_size[1]          # 36
    W = jax.random.normal(kw, (n_filters, patch_dim), dtype=jnp.float32)
    W = W / jnp.linalg.norm(W, axis=1, keepdims=True)

    fwd = jax.jit(functools.partial(
        ckn_layer_forward,
        patch_size=patch_size, stride=stride, patch_sigma=patch_sigma,
        kww_reg=kww_reg, num_newton_iters=num_newton_iters,
        subsampling_factor=subsampling_factor, pool_dim=pool_dim))

    out = jax.block_until_ready(fwd(x, W))

    assert out.shape == (2, n_filters, 7, 7), out.shape
    assert bool(jnp.all(jnp.isfinite(out)))
    print("KERNEL_OK")
</pallas_src>

<mosaic_0001>
module attributes {stable_mosaic.version = 11 : i64} {
  func.func @_ckn_project_kernel(%arg0: i32, %arg1: i32, %arg2: memref<1x36x196xf32, #tpu.memory_space<vmem>>, %arg3: memref<32x36xf32, #tpu.memory_space<vmem>>, %arg4: memref<32x32xf32, #tpu.memory_space<vmem>>, %arg5: memref<1x32x196xf32, #tpu.memory_space<vmem>>) attributes {dimension_semantics = [#tpu.dimension_semantics<parallel>, #tpu.dimension_semantics<parallel>], iteration_bounds = array<i64: 2, 1>, scalar_prefetch = 0 : i64, scratch_operands = 0 : i64, tpu.core_type = #tpu.core_type<tc>, window_params = [{transform_indices = @transform_0, window_bounds = array<i64: 1, 36, 196>}, {pipeline_mode = #tpu.pipeline_mode<synchronous>, transform_indices = @transform_1, window_bounds = array<i64: 32, 36>}, {pipeline_mode = #tpu.pipeline_mode<synchronous>, transform_indices = @transform_2, window_bounds = array<i64: 32, 32>}, {transform_indices = @transform_3, window_bounds = array<i64: 1, 32, 196>}]} {
    %c0 = arith.constant 0 : index
    %c0_0 = arith.constant 0 : index
    %c0_1 = arith.constant 0 : index
    %0 = vector.load %arg2[%c0, %c0_0, %c0_1] : memref<1x36x196xf32, #tpu.memory_space<vmem>>, vector<1x36x196xf32>
    %1 = vector.shape_cast %0 : vector<1x36x196xf32> to vector<36x196xf32>
    %2 = arith.mulf %1, %1 : vector<36x196xf32>
    %cst = arith.constant dense<0.000000e+00> : vector<196xf32>
    %3 = vector.multi_reduction <add>, %2, %cst [0] : vector<36x196xf32> to vector<196xf32>
    %4 = vector.shape_cast %3 : vector<196xf32> to vector<1x196xf32>
    %5 = math.sqrt %4 : vector<1x196xf32>
    %cst_2 = arith.constant 1.000000e-10 : f32
    %6 = vector.broadcast %cst_2 : f32 to vector<1x196xf32>
    %7 = arith.maximumf %5, %6 : vector<1x196xf32>
    %cst_3 = arith.constant 1.000000e+00 : f32
    %8 = vector.broadcast %cst_3 : f32 to vector<1x196xf32>
    %9 = arith.divf %8, %7 : vector<1x196xf32>
    %c0_4 = arith.constant 0 : index
    %c0_5 = arith.constant 0 : index
    %10 = vector.load %arg3[%c0_4, %c0_5] : memref<32x36xf32, #tpu.memory_space<vmem>>, vector<32x36xf32>
    %cst_6 = arith.constant dense<0.000000e+00> : vector<32x196xf32>
    %11 = tpu.matmul %10, %1, %cst_6 {dimension_numbers = #tpu.dot_dimension_numbers<[1], [0], [0], [1], [0, 0, 1, 1], [], []>} : vector<32x36xf32>, vector<36x196xf32>, vector<32x196xf32> -> vector<32x196xf32>
    %12 = vector.broadcast %9 : vector<1x196xf32> to vector<32x196xf32>
    %13 = arith.mulf %11, %12 : vector<32x196xf32>
    %cst_7 = arith.constant 2.77777767 : f32
    %14 = vector.broadcast %cst_7 : f32 to vector<32x196xf32>
    %15 = arith.subf %13, %14 : vector<32x196xf32>
    %16 = math.exp %15 : vector<32x196xf32>
    %c0_8 = arith.constant 0 : index
    %c0_9 = arith.constant 0 : index
    %17 = vector.load %arg4[%c0_8, %c0_9] : memref<32x32xf32, #tpu.memory_space<vmem>>, vector<32x32xf32>
    %cst_10 = arith.constant dense<0.000000e+00> : vector<32x196xf32>
    %18 = tpu.matmul %17, %16, %cst_10 {dimension_numbers = #tpu.dot_dimension_numbers<[1], [0], [0], [1], [0, 0, 1, 1], [], []>} : vector<32x32xf32>, vector<32x196xf32>, vector<32x196xf32> -> vector<32x196xf32>
    %19 = vector.broadcast %7 : vector<1x196xf32> to vector<32x196xf32>
    %20 = arith.mulf %18, %19 : vector<32x196xf32>
    %c0_11 = arith.constant 0 : index
    %c0_12 = arith.constant 0 : index
    %c0_13 = arith.constant 0 : index
    %21 = vector.load %arg5[%c0_11, %c0_12, %c0_13] : memref<1x32x196xf32, #tpu.memory_space<vmem>>, vector<1x32x196xf32>
    %22 = vector.shape_cast %21 : vector<1x32x196xf32> to vector<32x196xf32>
    %23 = vector.shape_cast %20 : vector<32x196xf32> to vector<1x32x196xf32>
    tpu.vector_store %arg5[%c0_11, %c0_12, %c0_13], %23 {strides = array<i32>} : memref<1x32x196xf32, #tpu.memory_space<vmem>>, vector<1x32x196xf32>,
    return
  }
  func.func @transform_0(%arg0: i32, %arg1: i32) -> (i32, i32, i32) {
    %c0_i32 = arith.constant 0 : i32
    %c0_i32_0 = arith.constant 0 : i32
    return %arg0, %c0_i32, %arg1 : i32, i32, i32
  }
  func.func @transform_1(%arg0: i32, %arg1: i32) -> (i32, i32) {
    %c0_i32 = arith.constant 0 : i32
    %c0_i32_0 = arith.constant 0 : i32
    %c0_i32_1 = arith.constant 0 : i32
    return %c0_i32, %c0_i32_0 : i32, i32
  }
  func.func @transform_2(%arg0: i32, %arg1: i32) -> (i32, i32) {
    %c0_i32 = arith.constant 0 : i32
    %c0_i32_0 = arith.constant 0 : i32
    %c0_i32_1 = arith.constant 0 : i32
    return %c0_i32, %c0_i32_0 : i32, i32
  }
  func.func @transform_3(%arg0: i32, %arg1: i32) -> (i32, i32, i32) {
    %c0_i32 = arith.constant 0 : i32
    %c0_i32_0 = arith.constant 0 : i32
    return %arg0, %c0_i32, %arg1 : i32, i32, i32
  }
}

</mosaic_0001>

<llo_original>
// kernel: ckn_layer_forward.1
$region0: #{ckn_layer_forward.1}
  #allocation0 [shape = 'u32[]', space=smem, size = 0x4, offset = 0x4, fixed_abs, tag = 'smem constant byte address 0x4 - core index']
  #allocation1 [shape = 'u32[72,128]{1,0:T(1,128)}', space=vmem, size = 0x9000, scoped, tag = 'internal scratch']
  %s0 = inlined_call_operand.vmem [shape: f32[2,36,196], index: 0, kind: input, shape index: {}]
  %s1 = inlined_call_operand.vmem [shape: f32[32,36], index: 1, kind: input, shape index: {}]
  %s2 = inlined_call_operand.vmem [shape: f32[32,32], index: 2, kind: input, shape index: {}]
  %s3 = inlined_call_operand.vmem [shape: f32[2,32,196], index: 3, kind: output, shape index: {}]
  %s4 = sld [smem:[#allocation0]]
  $region45: #{ckn_layer_forward.1} parent=0
    _
  %s6 = ssub.s32 1, %s4
  %s7 = scalar_select 0, %s6, %s4
  loop: start=0, step=1, limit=4
  $region2: #{ckn_layer_forward.1} parent=0 // loop_pre_header
    _
  $region3: #{ckn_layer_forward.1} parent=0 // loop_header
    %s9 = sphi 0, %s13
    %p10 = scmp.ge.s32.totalorder %s9, 4
    %s16 = sphi 0, %s28
    %s17 = sphi 0, %s24
    %s18 = sphi 0, %s16
    %s19 = sphi 0, %s17
    %s20 = sphi 0, %s18
    %s21 = sphi 0, %s19
    %s33 = sphi 0, %s35
    %s36 = sphi 0, %s33
    %s37 = sphi 0, %s36
    %s53 = sphi 0, %s37
    %s57 = sphi 0, %s57
    %s59 = sphi 0, %s57
    %s60 = sphi 0, %s59
    %s74 = sphi 0, %s60
    %s78 = sphi 0, %s78
    %s80 = sphi 0, %s78
    %s81 = sphi 0, %s80
    %s95 = sphi 0, %s81
    %s103 = sphi 0, %s105
    %s106 = sphi 0, %s103
    %s107 = sphi 0, %s106
    %s123 = sphi 0, %s107
  $region4: #{ckn_layer_forward.1} parent=0 // loop_header_branch
    %12 = sbr.rel (%p10) target = $region8
  $region5: #{ckn_layer_forward.1} parent=0 // loop_body
    %s14 = ssub.s32 %s9, 1
    %s15 = ssub.s32 %s9, 2
    %s22 = sadd.s32 1, %s17
    %p23 = scmp.ge.s32.totalorder %s22, 1
    %s24 = scalar_select %p23, 0, %s22
    %s25 = sadd.s32 1, %s16
    %s26 = scalar_select %p23, %s25, %s16
    %p27 = scmp.ge.s32.totalorder %s26, 2
    %s28 = scalar_select %p27, 0, %s26
    %s29 = ssub.s32 %s16, %s28
    %s30 = ssub.s32 %s17, %s24
    %s31 = sor.u32 %s29, %s30
    %p32 = scmp.eq.s32.totalorder %s31, 0
    %s34 = sadd.s32 %s33, 1
    %s35 = scalar_select %p32, %s33, %s34
    %p38 = pneg %p32
    %p39 = scmp.eq.s32.totalorder %s9, 1
    %p40 = por %p38, %p39
    %p41 = scmp.ne.s32.totalorder %s33, %s36
    %p42 = scmp.eq.s32.totalorder %s9, 0
    %p43 = por %p41, %p42
    %p44 = scmp.ne.s32.totalorder %s33, %s36
    %p45 = scmp.eq.s32.totalorder %s14, 1
    %p46 = por %p44, %p45
    %p47 = scmp.ne.s32.totalorder %s36, %s37
    %p48 = scmp.eq.s32.totalorder %s14, 0
    %p49 = por %p47, %p48
    %p50 = scmp.ne.s32.totalorder %s36, %s37
    %p51 = scmp.eq.s32.totalorder %s15, 1
    %p52 = por %p50, %p51
    %p54 = scmp.ne.s32.totalorder %s37, %s53
    %p55 = scmp.eq.s32.totalorder %s15, 0
    %p56 = por %p54, %p55
    %s58 = sadd.s32 %s57, 1
    %p61 = scmp.eq.s32.totalorder %s9, 1
    %p62 = scmp.ne.s32.totalorder %s57, %s59
    %p63 = scmp.eq.s32.totalorder %s9, 0
    %p64 = por %p62, %p63
    %p65 = scmp.ne.s32.totalorder %s57, %s59
    %p66 = scmp.eq.s32.totalorder %s14, 1
    %p67 = por %p65, %p66
    %p68 = scmp.ne.s32.totalorder %s59, %s60
    %p69 = scmp.eq.s32.totalorder %s14, 0
    %p70 = por %p68, %p69
    %p71 = scmp.ne.s32.totalorder %s59, %s60
    %p72 = scmp.eq.s32.totalorder %s15, 1
    %p73 = por %p71, %p72
    %p75 = scmp.ne.s32.totalorder %s60, %s74
    %p76 = scmp.eq.s32.totalorder %s15, 0
    %p77 = por %p75, %p76
    %s79 = sadd.s32 %s78, 1
    %p82 = scmp.eq.s32.totalorder %s9, 1
    %p83 = scmp.ne.s32.totalorder %s78, %s80
    %p84 = scmp.eq.s32.totalorder %s9, 0
    %p85 = por %p83, %p84
    %p86 = scmp.ne.s32.totalorder %s78, %s80
    %p87 = scmp.eq.s32.totalorder %s14, 1
    %p88 = por %p86, %p87
    %p89 = scmp.ne.s32.totalorder %s80, %s81
    %p90 = scmp.eq.s32.totalorder %s14, 0
    %p91 = por %p89, %p90
    %p92 = scmp.ne.s32.totalorder %s80, %s81
    %p93 = scmp.eq.s32.totalorder %s15, 1
    %p94 = por %p92, %p93
    %p96 = scmp.ne.s32.totalorder %s81, %s95
    %p97 = scmp.eq.s32.totalorder %s15, 0
    %p98 = por %p96, %p97
    %s99 = ssub.s32 %s16, %s28
    %s100 = ssub.s32 %s17, %s24
    %s101 = sor.u32 %s99, %s100
    %p102 = scmp.eq.s32.totalorder %s101, 0
    %s104 = sadd.s32 %s103, 1
    %s105 = scalar_select %p102, %s103, %s104
    %p108 = pneg %p102
    %p109 = scmp.eq.s32.totalorder %s9, 1
    %p110 = por %p108, %p109
    %p111 = scmp.ne.s32.totalorder %s103, %s106
    %p112 = scmp.eq.s32.totalorder %s9, 0
    %p113 = por %p111, %p112
    %p114 = scmp.ne.s32.totalorder %s103, %s106
    %p115 = scmp.eq.s32.totalorder %s14, 1
    %p116 = por %p114, %p115
    %p117 = scmp.ne.s32.totalorder %s106, %s107
    %p118 = scmp.eq.s32.totalorder %s14, 0
    %p119 = por %p117, %p118
    %p120 = scmp.ne.s32.totalorder %s106, %s107
    %p121 = scmp.eq.s32.totalorder %s15, 1
    %p122 = por %p120, %p121
    %p124 = scmp.ne.s32.totalorder %s107, %s123
    %p125 = scmp.eq.s32.totalorder %s15, 0
    %p126 = por %p124, %p125
    %p127 = scmp.le.s32.totalorder 1, %s9
    %p128 = scmp.lt.s32.totalorder %s9, 3
    %p129 = pnand %p127, %p128
    %p130 = pneg %p129
    // Predicated region
    $region9: #{ckn_layer_forward.1} parent=5 // pred_check
      _
    $region10: #{ckn_layer_forward.1} parent=5 // pred_check_branch
      %132 = sbr.rel (%p129) target = $region12
    $region11: #{ckn_layer_forward.1} parent=5 // pred_region
      %s133 = ssub.s32 %s9, 1
      // Predicated region
      $region13: #{ckn_layer_forward.1} parent=11 // pred_check
        %p134 = pneg %p70
      $region14: #{ckn_layer_forward.1} parent=11 // pred_check_branch
        %136 = sbr.rel (%p134) target = $region16
      $region15: #{ckn_layer_forward.1} parent=11 // pred_region
        _
      $region16: #{ckn_layer_forward.1} parent=11 // pred_fallthru
        _
      // Predicated region
      $region17: #{ckn_layer_forward.1} parent=11 // pred_check
        %p137 = pneg %p91
      $region18: #{ckn_layer_forward.1} parent=11 // pred_check_branch
        %139 = sbr.rel (%p137) target = $region20
      $region19: #{ckn_layer_forward.1} parent=11 // pred_region
        _
      $region20: #{ckn_layer_forward.1} parent=11 // pred_fallthru
        _
    $region12: #{ckn_layer_forward.1} parent=5 // pred_fallthru
      _
    %p140 = scmp.lt.s32.totalorder %s9, 2
    // Predicated region
    $region21: #{ckn_layer_forward.1} parent=5 // pred_check
      %p141 = pneg %p140
    $region22: #{ckn_layer_forward.1} parent=5 // pred_check_branch
      %143 = sbr.rel (%p141) target = $region24
    $region23: #{ckn_layer_forward.1} parent=5 // pred_region
      // Predicated region
      $region25: #{ckn_layer_forward.1} parent=23 // pred_check
        %p144 = pneg %p43
      $region26: #{ckn_layer_forward.1} parent=23 // pred_check_branch
        %146 = sbr.rel (%p144) target = $region28
      $region27: #{ckn_layer_forward.1} parent=23 // pred_region
        %s147 = smul.u32 2, %s17
        %p148 = scmp.lt.s32.totalorder %s16, 1
        %s149 = scalar_select %p148, %s16, 1
        %p150 = scmp.lt.s32.totalorder %s147, 1
        %s151 = scalar_select %p150, %s147, 1
        %s152 = smul.addr %s149, 10
        %s153 = sadd.s32 %s151, %s152
        %s154 = smul.addr %s153, 8
        %s155 = scalar_lea.vmem %s0, %s154
        %s156 = smul.u32 2, %s17
      $region28: #{ckn_layer_forward.1} parent=23 // pred_fallthru
        _
    $region24: #{ckn_layer_forward.1} parent=5 // pred_fallthru
      _
    %p157 = scmp.le.s32.totalorder 1, %s9
    %p158 = scmp.lt.s32.totalorder %s9, 3
    %p159 = pnand %p157, %p158
    %p160 = pneg %p159
    // Predicated region
    $region29: #{ckn_layer_forward.1} parent=5 // pred_check
      _
    $region30: #{ckn_layer_forward.1} parent=5 // pred_check_branch
      %162 = sbr.rel (%p159) target = $region32
    $region31: #{ckn_layer_forward.1} parent=5 // pred_region
      %s163 = ssub.s32 %s9, 1
      %s164 = smul.u32 2, %s19
      %p165 = scmp.lt.s32.totalorder %s18, 1
      %s166 = scalar_select %p165, %s18, 1
      %p167 = scmp.lt.s32.totalorder %s164, 1
      %s168 = scalar_select %p167, %s164, 1
      %s169 = smul.addr %s166, 10
      %s170 = sadd.s32 %s168, %s169
      %s171 = smul.addr %s170, 8
      %s172 = scalar_lea.vmem %s0, %s171
      %p173 = pneg %p49
      %p174 = pneg %p46
      %p175 = pneg %p70
      %p176 = pneg %p67
      %p177 = pneg %p91
      %p178 = pneg %p88
      %p179 = pneg %p119
      %p180 = pneg %p116
      %s181 = smul.u32 2, %s19
      %p182 = scmp.lt.s32.totalorder %s18, 1
      %s183 = scalar_select %p182, %s18, 1
      %p184 = scmp.lt.s32.totalorder %s181, 1
      %s185 = scalar_select %p184, %s181, 1
      %s186 = smul.addr %s183, 8
      %s187 = sadd.s32 %s185, %s186
      %s188 = smul.addr %s187, 8
      %s189 = scalar_lea.vmem %s3, %s188
      %s190 = smul.u32 2, %s19
      %p191 = scmp.lt.s32.totalorder %s18, 1
      %s192 = scalar_select %p191, %s18, 1
      %p193 = scmp.lt.s32.totalorder %s190, 1
      %s194 = scalar_select %p193, %s190, 1
      %s195 = smul.addr %s192, 10
      %s196 = sadd.s32 %s194, %s195
      %s197 = smul.addr %s196, 8
      %s198 = scalar_lea.vmem %s0, %s197
      %s199 = smul.u32 2, %s19
      %s200 = smul.u32 2, %s19
      %p201 = scmp.lt.s32.totalorder %s18, 1
      %s202 = scalar_select %p201, %s18, 1
      %p203 = scmp.lt.s32.totalorder %s200, 1
      %s204 = scalar_select %p203, %s200, 1
      %s205 = smul.addr %s202, 8
      %s206 = sadd.s32 %s204, %s205
      %s207 = smul.addr %s206, 8
      %s208 = scalar_lea.vmem %s3, %s207
      %s209 = smul.u32 2, %s19
      %v210 = vld [vmem:[%s198] sm:$0xff]
      %v211 = vld [vmem:[%s198 + $0x8] sm:$0xff]
      %v212 = vld [vmem:[%s198 + $0x10] sm:$0xff]
      %v213 = vld [vmem:[%s198 + $0x18] sm:$0xff]
      %v214 = vld [vmem:[%s198 + $0x20] sm:$0xff]
      %v215 = vld [vmem:[%s198 + $0x28] sm:$0xff]
      %v216 = vld [vmem:[%s198 + $0x30] sm:$0xff]
      %v217 = vld [vmem:[%s198 + $0x38] sm:$0xff]
      %v218 = vld [vmem:[%s198 + $0x40] sm:$0xf]
      %v219 = vld [vmem:[%s198 + $0x48] sm:$0xf]
      %v220 = vmul.f32 %v210, %v210
      %v221 = vmul.f32 %v211, %v211
      %v222 = vmul.f32 %v212, %v212
      %v223 = vmul.f32 %v213, %v213
      %v224 = vmul.f32 %v214, %v214
      %v225 = vmul.f32 %v215, %v215
      %v226 = vmul.f32 %v216, %v216
      %v227 = vmul.f32 %v217, %v217
      %v228 = vmul.f32 %v218, %v218
      %v229 = vmul.f32 %v219, %v219
      %v230 = vadd.f32 %v220, %v222
      %v231 = vadd.f32 %v230, %v224
      %v232 = vadd.f32 %v231, %v226
      %vm233 = vcmask 1043456
      %v234 = vsel %vm233, %v228, 0.0
      %v235 = vadd.f32 %v232, %v234
      %v236 = vrot.slane %v235, 4
      %v237 = vadd.f32 %v235, %v236
      %v238 = vrot.slane %v237, 2
      %v239 = vadd.f32 %v237, %v238
      %v240 = vrot.slane %v239, 1
      %v241 = vadd.f32 %v239, %v240
      %vm242 = vcmask 556032
      %v243 = vsel %vm242, %v221, 0.0
      %v244 = vsel %vm242, %v223, 0.0
      %v245 = vadd.f32 %v243, %v244
      %v246 = vsel %vm242, %v225, 0.0
      %v247 = vadd.f32 %v245, %v246
      %v248 = vsel %vm242, %v227, 0.0
      %v249 = vadd.f32 %v247, %v248
      %vm250 = vcmask 551936
      %v251 = vsel %vm250, %v229, 0.0
      %v252 = vadd.f32 %v249, %v251
      %v253 = vrot.slane %v252, 4
      %v254 = vadd.f32 %v252, %v253
      %v255 = vrot.slane %v254, 2
      %v256 = vadd.f32 %v254, %v255
      %v257 = vrot.slane %v256, 1
      %v258 = vadd.f32 %v256, %v257
      %v259 = vrsqrt.pop %v241
      %v260 = vmul.f32 %v259, %v241
      %v261 = vmul.f32 %v260, %v259
      %v262 = vmul.f32 0.5, %v261
      %v263 = vsub.f32 1.5, %v262
      %v264 = vmul.f32 %v259, %v263
      %v265 = vmul.f32 %v241, %v264
      %vm266 = vcmp.eq.f32.partialorder %v241, inf
      %v267 = vsel %vm266, %v241, %v265
      %vm268 = vcmp.eq.f32.partialorder %v241, 0.0
      %v269 = vand.u32 %v241, 2147483648
      %v270 = vsel %vm268, %v269, %v267
      %v271 = vrsqrt.pop %v258
      %v272 = vmul.f32 %v271, %v258
      %v273 = vmul.f32 %v272, %v271
      %v274 = vmul.f32 0.5, %v273
      %v275 = vsub.f32 1.5, %v274
      %v276 = vmul.f32 %v271, %v275
      %v277 = vmul.f32 %v258, %v276
      %vm278 = vcmp.eq.f32.partialorder %v258, inf
      %v279 = vsel %vm278, %v258, %v277
      %vm280 = vcmp.eq.f32.partialorder %v258, 0.0
      %v281 = vand.u32 %v258, 2147483648
      %v282 = vsel %vm280, %v281, %v279
      %v283 = vmax.f32 %v270, 1e-10
      %v284 = vmax.f32 %v282, 1e-10
      %v285 = vrcp.pop %v283
      %v286 = vmul.f32 %v283, %v285
      %v287 = vsub.f32 1.0, %v286
      %v288 = vmul.f32 %v285, %v287
      %v289 = vadd.f32 %v285, %v288
      %vm290 = vweird.f32 %v283
      %vm291 = vweird.f32 %v285
      %vm292 = vmor %vm290, %vm291
      %v293 = vsel %vm292, %v285, %v289
      %v294 = vand.u32 2147483647, %v283
      %vm295 = vcmp.eq.f32.partialorder %v294, 8.507059e+37
      %v296 = vand.u32 %v283, 2147483648
      %v297 = vor.u32 1.1754944e-38, %v296
      %v298 = vsel %vm295, %v297, %v293
      %v299 = vmul.f32 1.0, %v298
      %v300 = vrcp.pop %v284
      %v301 = vmul.f32 %v284, %v300
      %v302 = vsub.f32 1.0, %v301
      %v303 = vmul.f32 %v300, %v302
      %v304 = vadd.f32 %v300, %v303
      %vm305 = vweird.f32 %v284
      %vm306 = vweird.f32 %v300
      %vm307 = vmor %vm305, %vm306
      %v308 = vsel %vm307, %v300, %v304
      %v309 = vand.u32 2147483647, %v284
      %vm310 = vcmp.eq.f32.partialorder %v309, 8.507059e+37
      %v311 = vand.u32 %v284, 2147483648
      %v312 = vor.u32 1.1754944e-38, %v311
      %v313 = vsel %vm310, %v312, %v308
      %v314 = vmul.f32 1.0, %v313
      %v315 = vld [vmem:[%s1] sm:$0xff]
      %v316 = vld [vmem:[%s1 + $0x8] sm:$0xff]
      %v317 = vld [vmem:[%s1 + $0x10] sm:$0xff]
      %v318 = vld [vmem:[%s1 + $0x18] sm:$0xff]
      %vm319 = vcmask 293888
      %v321 = vsel %vm319, %v315, 0
      %v324 = vsel %vm319, %v316, 0
      %v327 = vsel %vm319, %v317, 0
      %v330 = vsel %vm319, %v318, 0
      %v333 = vsel %vm233, %v218, 0
      %v336 = vsel %vm233, %v219, 0
      %338 = vmatpush.msra.mxu0 0.0
      %339 = vmatpush.msra.mxu0 0.0
      %340 = vmatpush.msra.mxu0 0.0
      %341 = vmatpush.msra.mxu0 0.0
      %342 = vmatpush.msra.mxu0 0.0
      %343 = vmatpush.msra.mxu0 0.0
      %344 = vmatpush.msra.mxu0 0.0
      %345 = vmatpush.msra.mxu0 0.0
      %346 = vmatpush.msra.mxu0 0.0
      %347 = vmatpush.msra.mxu0 0.0
      %348 = vmatpush.msra.mxu0 0.0
      %349 = vmatpush.msra.mxu0 %v333
      %350 = vmatpush.msra.mxu0 %v216
      %351 = vmatpush.msra.mxu0 %v214
      %352 = vmatpush.msra.mxu0 %v212
      %353 = vmatpush.msra.mxu0 %v210
      %354 = vmatmul.f32.gmra.mxu0 %v321
      %v355 = vpop.f32.mrf.mxu0
      %v356 = vadd.f32 0.0, %v355
      %357 = vmatmul.f32.gmra.mxu0 %v324
      %v358 = vpop.f32.mrf.mxu0
      %v359 = vadd.f32 0.0, %v358
      %360 = vmatmul.f32.gmra.mxu0 %v327
      %v361 = vpop.f32.mrf.mxu0
      %v362 = vadd.f32 0.0, %v361
      %363 = vmatmul.f32.gmra.mxu0 %v330
      %v364 = vpop.f32.mrf.mxu0
      %v365 = vadd.f32 0.0, %v364
      %366 = vdwg.mxu0
      %367 = vmatpush.msra.mxu0 0.0
      %368 = vmatpush.msra.mxu0 0.0
      %369 = vmatpush.msra.mxu0 0.0
      %370 = vmatpush.msra.mxu0 0.0
      %371 = vmatpush.msra.mxu0 0.0
      %372 = vmatpush.msra.mxu0 0.0
      %373 = vmatpush.msra.mxu0 0.0
      %374 = vmatpush.msra.mxu0 0.0
      %375 = vmatpush.msra.mxu0 0.0
      %376 = vmatpush.msra.mxu0 0.0
      %377 = vmatpush.msra.mxu0 0.0
      %378 = vmatpush.msra.mxu0 %v336
      %379 = vmatpush.msra.mxu0 %v217
      %380 = vmatpush.msra.mxu0 %v215
      %381 = vmatpush.msra.mxu0 %v213
      %382 = vmatpush.msra.mxu0 %v211
      %383 = vmatmul.f32.gmra.mxu0 %v321
      %v384 = vpop.f32.mrf.mxu0
      %v385 = vadd.f32 0.0, %v384
      %386 = vmatmul.f32.gmra.mxu0 %v324
      %v387 = vpop.f32.mrf.mxu0
      %v388 = vadd.f32 0.0, %v387
      %389 = vmatmul.f32.gmra.mxu0 %v327
      %v390 = vpop.f32.mrf.mxu0
      %v391 = vadd.f32 0.0, %v390
      %392 = vmatmul.f32.gmra.mxu0 %v330
      %v393 = vpop.f32.mrf.mxu0
      %v394 = vadd.f32 0.0, %v393
      %395 = vdwg.mxu0
      %v396 = vmul.f32 %v356, %v299
      %v397 = vmul.f32 %v385, %v314
      %v398 = vmul.f32 %v359, %v299
      %v399 = vmul.f32 %v388, %v314
      %v400 = vmul.f32 %v362, %v299
      %v401 = vmul.f32 %v391, %v314
      %v402 = vmul.f32 %v365, %v299
      %v403 = vmul.f32 %v394, %v314
      %v404 = vsub.f32 %v396, 2.7777777
      %v405 = vsub.f32 %v397, 2.7777777
      %v406 = vsub.f32 %v398, 2.7777777
      %v407 = vsub.f32 %v399, 2.7777777
      %v408 = vsub.f32 %v400, 2.7777777
      %v409 = vsub.f32 %v401, 2.7777777
      %v410 = vsub.f32 %v402, 2.7777777
      %v411 = vsub.f32 %v403, 2.7777777
      %v412 = vmul.f32 %v404, 1.442695
      %v413 = vpow.pop %v412
      %v414 = vmul.f32 %v405, 1.442695
      %v415 = vpow.pop %v414
      %v416 = vmul.f32 %v406, 1.442695
      %v417 = vpow.pop %v416
      %v418 = vmul.f32 %v407, 1.442695
      %v419 = vpow.pop %v418
      %v420 = vmul.f32 %v408, 1.442695
      %v421 = vpow.pop %v420
      %v422 = vmul.f32 %v409, 1.442695
      %v423 = vpow.pop %v422
      %v424 = vmul.f32 %v410, 1.442695
      %v425 = vpow.pop %v424
      %v426 = vmul.f32 %v411, 1.442695
      %v427 = vpow.pop %v426
      %v428 = vld [vmem:[%s2] sm:$0xff]
      %v429 = vld [vmem:[%s2 + $0x8] sm:$0xff]
      %v430 = vld [vmem:[%s2 + $0x10] sm:$0xff]
      %v431 = vld [vmem:[%s2 + $0x18] sm:$0xff]
      %vm432 = vcmask 261120
      %v434 = vsel %vm432, %v428, 0
      %v437 = vsel %vm432, %v429, 0
      %v440 = vsel %vm432, %v430, 0
      %v443 = vsel %vm432, %v431, 0
      %445 = vmatpush.msra.mxu0 0.0
      %446 = vmatpush.msra.mxu0 0.0
      %447 = vmatpush.msra.mxu0 0.0
      %448 = vmatpush.msra.mxu0 0.0
      %449 = vmatpush.msra.mxu0 0.0
      %450 = vmatpush.msra.mxu0 0.0
      %451 = vmatpush.msra.mxu0 0.0
      %452 = vmatpush.msra.mxu0 0.0
      %453 = vmatpush.msra.mxu0 0.0
      %454 = vmatpush.msra.mxu0 0.0
      %455 = vmatpush.msra.mxu0 0.0
      %456 = vmatpush.msra.mxu0 0.0
      %457 = vmatpush.msra.mxu0 %v425
      %458 = vmatpush.msra.mxu0 %v421
      %459 = vmatpush.msra.mxu0 %v417
      %460 = vmatpush.msra.mxu0 %v413
      %461 = vmatmul.f32.gmra.mxu0 %v434
      %v462 = vpop.f32.mrf.mxu0
      %v463 = vadd.f32 0.0, %v462
      %464 = vmatmul.f32.gmra.mxu0 %v437
      %v465 = vpop.f32.mrf.mxu0
      %v466 = vadd.f32 0.0, %v465
      %467 = vmatmul.f32.gmra.mxu0 %v440
      %v468 = vpop.f32.mrf.mxu0
      %v469 = vadd.f32 0.0, %v468
      %470 = vmatmul.f32.gmra.mxu0 %v443
      %v471 = vpop.f32.mrf.mxu0
      %v472 = vadd.f32 0.0, %v471
      %473 = vdwg.mxu0
      %474 = vmatpush.msra.mxu0 0.0
      %475 = vmatpush.msra.mxu0 0.0
      %476 = vmatpush.msra.mxu0 0.0
      %477 = vmatpush.msra.mxu0 0.0
      %478 = vmatpush.msra.mxu0 0.0
      %479 = vmatpush.msra.mxu0 0.0
      %480 = vmatpush.msra.mxu0 0.0
      %481 = vmatpush.msra.mxu0 0.0
      %482 = vmatpush.msra.mxu0 0.0
      %483 = vmatpush.msra.mxu0 0.0
      %484 = vmatpush.msra.mxu0 0.0
      %485 = vmatpush.msra.mxu0 0.0
      %486 = vmatpush.msra.mxu0 %v427
      %487 = vmatpush.msra.mxu0 %v423
      %488 = vmatpush.msra.mxu0 %v419
      %489 = vmatpush.msra.mxu0 %v415
      %490 = vmatmul.f32.gmra.mxu0 %v434
      %v491 = vpop.f32.mrf.mxu0
      %v492 = vadd.f32 0.0, %v491
      %493 = vmatmul.f32.gmra.mxu0 %v437
      %v494 = vpop.f32.mrf.mxu0
      %v495 = vadd.f32 0.0, %v494
      %496 = vmatmul.f32.gmra.mxu0 %v440
      %v497 = vpop.f32.mrf.mxu0
      %v498 = vadd.f32 0.0, %v497
      %499 = vmatmul.f32.gmra.mxu0 %v443
      %v500 = vpop.f32.mrf.mxu0
      %v501 = vadd.f32 0.0, %v500
      %502 = vdwg.mxu0
      %v503 = vmul.f32 %v463, %v283
      %v504 = vmul.f32 %v492, %v284
      %v505 = vmul.f32 %v466, %v283
      %v506 = vmul.f32 %v495, %v284
      %v507 = vmul.f32 %v469, %v283
      %v508 = vmul.f32 %v498, %v284
      %v509 = vmul.f32 %v472, %v283
      %v510 = vmul.f32 %v501, %v284
      %511 = vst [vmem:[%s208] sm:$0xff] %v503
      %512 = vst.msk [vmem:[%s208 + $0x8] sm:$0xff] %vm242, %v504
      %513 = vst [vmem:[%s208 + $0x10] sm:$0xff] %v505
      %514 = vst.msk [vmem:[%s208 + $0x18] sm:$0xff] %vm242, %v506
      %515 = vst [vmem:[%s208 + $0x20] sm:$0xff] %v507
      %516 = vst.msk [vmem:[%s208 + $0x28] sm:$0xff] %vm242, %v508
      %517 = vst [vmem:[%s208 + $0x30] sm:$0xff] %v509
      %518 = vst.msk [vmem:[%s208 + $0x38] sm:$0xff] %vm242, %v510
      %s519 = smul.u32 2, %s19
      %p520 = scmp.lt.s32.totalorder %s18, 1
      %s521 = scalar_select %p520, %s18, 1
      %p522 = scmp.lt.s32.totalorder %s519, 1
      %s523 = scalar_select %p522, %s519, 1
      %s524 = smul.addr %s521, 8
      %s525 = sadd.s32 %s523, %s524
      %s526 = smul.addr %s525, 8
      %s527 = scalar_lea.vmem %s3, %s526
      // Predicated region
      $region33: #{ckn_layer_forward.1} parent=31 // pred_check
        %p528 = pneg %p116
      $region34: #{ckn_layer_forward.1} parent=31 // pred_check_branch
        %530 = sbr.rel (%p528) target = $region36
      $region35: #{ckn_layer_forward.1} parent=31 // pred_region
        %s531 = smul.u32 2, %s19
      $region36: #{ckn_layer_forward.1} parent=31 // pred_fallthru
        _
    $region32: #{ckn_layer_forward.1} parent=5 // pred_fallthru
      _
    %p532 = scmp.le.s32.totalorder 2, %s9
    // Predicated region
    $region37: #{ckn_layer_forward.1} parent=5 // pred_check
      %p533 = pneg %p532
    $region38: #{ckn_layer_forward.1} parent=5 // pred_check_branch
      %535 = sbr.rel (%p533) target = $region40
    $region39: #{ckn_layer_forward.1} parent=5 // pred_region
      %s536 = ssub.s32 %s9, 2
      // Predicated region
      $region41: #{ckn_layer_forward.1} parent=39 // pred_check
        %p537 = pneg %p122
      $region42: #{ckn_layer_forward.1} parent=39 // pred_check_branch
        %539 = sbr.rel (%p537) target = $region44
      $region43: #{ckn_layer_forward.1} parent=39 // pred_region
        %s540 = smul.u32 2, %s21
        %p541 = scmp.lt.s32.totalorder %s20, 1
        %s542 = scalar_select %p541, %s20, 1
        %p543 = scmp.lt.s32.totalorder %s540, 1
        %s544 = scalar_select %p543, %s540, 1
        %s545 = smul.addr %s542, 8
        %s546 = sadd.s32 %s544, %s545
        %s547 = smul.addr %s546, 8
        %s548 = scalar_lea.vmem %s3, %s547
      $region44: #{ckn_layer_forward.1} parent=39 // pred_fallthru
        _
    $region40: #{ckn_layer_forward.1} parent=5 // pred_fallthru
      _
  $region6: #{ckn_layer_forward.1} parent=0 // loop_footer
    %s13 = sadd.s32 1, %s9
  $region7: #{ckn_layer_forward.1} parent=0 // loop_footer_branch
    %8 = sbr.rel target = $region3
  $region8: #{ckn_layer_forward.1} parent=0 // loop_exit
    _

</llo_original>
